<compile_context>
chip_gen: v7x
topology: tpu7x:2x2x1
jax: 0.10.0
libtpu: 0.0.40
codegen_flags: <defaults>
</compile_context>

<pallas_src>
import jax
import jax.numpy as jnp
from jax.experimental import pallas as pl
from jax.experimental.pallas import tpu as pltpu


_LANE_CANDIDATES = (4096, 2048, 1024, 512, 256, 128)


def _copy_kernel(x_ref, o_ref):
    # Whole-tile copy; the only work an Identity can ever have.
    o_ref[...] = x_ref[...]


def _tpu_copy_config():
    """Per-generation (tile_bytes, vmem_limit_bytes, min_grid_steps)."""
    try:
        kind = jax.devices()[0].device_kind.lower()
    except Exception:
        kind = ""
    if "v5 lite" in kind or "v5e" in kind or "v5lite" in kind:
        # v5e: 16 MiB scoped-VMEM default -> keep 2 MiB tiles (4x = 8 MiB).
        return 2 * 1024 * 1024, None, 1
    if "7" in kind:
        # v7x: 64 MiB physical VMEM, 3.2 TB/s HBM -> bigger tiles amortize the
        # ~0.35 us/step overhead; 4x8 MiB = 32 MiB <= 48 MiB limit.
        return 8 * 1024 * 1024, 48 << 20, 2
    if "v6" in kind:
        # v6e: 128 MiB physical -> 4 MiB tiles (4x = 16 MiB) with headroom.
        return 4 * 1024 * 1024, 64 << 20, 1
    # Conservative default: fits every generation's scoped-VMEM default.
    return 2 * 1024 * 1024, None, 1


def _pallas_copy_whole(x):
    """Single-block copy (whole array resident in VMEM). Small arrays only."""
    return pl.pallas_call(
        _copy_kernel,
        out_shape=jax.ShapeDtypeStruct(x.shape, x.dtype),
    )(x)


def _pallas_copy_lane_dense(x2, *, tile_bytes, vmem_limit_bytes, min_grid_steps,
                            donate):
    """Streaming copy of a lane-dense 2-D slab (last dim a multiple of 128)."""
    rows, lane = x2.shape
    itemsize = jnp.dtype(x2.dtype).itemsize
    # dtype-aware sublane packing: 8 rows (4B), 16 (2B), 32 (1B).
    sublane = {4: 8, 2: 16, 1: 32}.get(itemsize, 8)

    # Largest dtype-aligned row tile under the per-generation VMEM budget
    # (in + out, double-buffered => ~4x tile bytes resident).
    rows_per_tile = max(sublane, (tile_bytes // (lane * itemsize)) // sublane * sublane)
    if rows <= rows_per_tile:
        rows_per_tile = rows  # full-extent block is always legal
    # Megacore (v7x): don't collapse a splittable array into one grid step —
    # both TensorCores should get work on the 'parallel' axis.
    if min_grid_steps > 1 and rows > sublane and pl.cdiv(rows, rows_per_tile) < min_grid_steps:
        rows_per_tile = max(sublane,
                            pl.cdiv(pl.cdiv(rows, min_grid_steps), sublane) * sublane)

    grid = (pl.cdiv(rows, rows_per_tile),)

    cp_kwargs = dict(dimension_semantics=("parallel",))
    if vmem_limit_bytes is not None:
        cp_kwargs["vmem_limit_bytes"] = vmem_limit_bytes

    return pl.pallas_call(
        _copy_kernel,
        out_shape=jax.ShapeDtypeStruct((rows, lane), x2.dtype),
        grid_spec=pltpu.PrefetchScalarGridSpec(
            num_scalar_prefetch=0,
            grid=grid,
            in_specs=[pl.BlockSpec((rows_per_tile, lane), lambda i: (i, 0))],
            out_specs=pl.BlockSpec((rows_per_tile, lane), lambda i: (i, 0)),
        ),
        compiler_params=pltpu.CompilerParams(**cp_kwargs),
        # Only alias when the caller guarantees the input is dead after this
        # call; otherwise XLA inserts a defensive copy anyway.
        input_output_aliases=({0: 0} if donate else {}),
        # Pure memory op: 0 flops, read + write of the whole slab.
        cost_estimate=pl.CostEstimate(
            flops=0, transcendentals=0,
            bytes_accessed=2 * rows * lane * itemsize),
    )(x2)


def identity(x, *, materialize=False, donate=False):
    """Identity forward pass (misc.Identity).

    Default (materialize=False): returns `x` unchanged — the true Identity is
    zero HBM traffic, so no kernel is launched.  This is also the small-array
    bypass: no copy kernel can ever beat `return x`.

    materialize=True: produce the result through a Pallas streaming-copy
    kernel (only useful when a physically distinct output buffer is required,
    e.g. to force a layout or consume a donated input).  Pass donate=True only
    if `x` is dead after this call (e.g. jit donate_argnums); otherwise the
    input/output aliasing is not honored by XLA.
    """
    if not materialize:
        return x

    n = x.size
    if n == 0:
        return x

    orig_shape = x.shape
    tile_bytes, vmem_limit_bytes, min_grid_steps = _tpu_copy_config()
    flat = x.reshape(-1)

    if n % 128 == 0:
        # Lane-dense path: unmasked full-width stores on every block.
        lane = next(c for c in _LANE_CANDIDATES if n % c == 0)
        out = _pallas_copy_lane_dense(
            flat.reshape(n // lane, lane),
            tile_bytes=tile_bytes, vmem_limit_bytes=vmem_limit_bytes,
            min_grid_steps=min_grid_steps, donate=donate)
        return out.reshape(orig_shape)

    # n not divisible by 128: lane-dense main slab + tiny remainder copy
    # (avoids masked partial stores on the bulk of the data).
    main_n = (n // 128) * 128
    if main_n == 0:
        # Fewer than 128 elements: one whole-array block, negligible cost.
        return _pallas_copy_whole(flat.reshape(1, n)).reshape(orig_shape)

    lane = next(c for c in _LANE_CANDIDATES if main_n % c == 0)
    main = _pallas_copy_lane_dense(
        flat[:main_n].reshape(main_n // lane, lane),
        tile_bytes=tile_bytes, vmem_limit_bytes=vmem_limit_bytes,
        min_grid_steps=min_grid_steps, donate=False)
    rem = _pallas_copy_whole(flat[main_n:].reshape(1, n - main_n))
    # NOTE: the concatenate is an XLA-level stitch of the two copied pieces;
    # for a real Identity prefer materialize=False (zero traffic).
    return jnp.concatenate([main.reshape(-1), rem.reshape(-1)]).reshape(orig_shape)


if __name__ == "__main__":
    d = 32           # Identity(d): in_features = out_features = d (no params)
    batch = 8
    key = jax.random.PRNGKey(0)
    x = jax.random.normal(key, (batch, d), dtype=jnp.float32)

    # 1) Module-faithful forward: zero-cost identity (no kernel launched).
    y0 = identity(x)
    jax.block_until_ready(y0)
    assert y0.shape == x.shape and y0.dtype == x.dtype
    assert bool(jnp.array_equal(y0, x))

    # 2) Exercise the Pallas lane-dense copy kernel (8*32 = 256, divisible by 128).
    y1 = identity(x, materialize=True)
    jax.block_until_ready(y1)
    assert y1.shape == x.shape and y1.dtype == x.dtype
    assert bool(jnp.array_equal(y1, x))

    # 3) Exercise the non-128-divisible path (lane-dense main slab + remainder).
    x2 = jax.random.normal(jax.random.PRNGKey(0), (5, 33), dtype=jnp.float32)
    y2 = identity(x2, materialize=True)
    jax.block_until_ready(y2)
    assert y2.shape == x2.shape and y2.dtype == x2.dtype
    assert bool(jnp.array_equal(y2, x2))

    print("KERNEL_OK")
</pallas_src>

<mosaic_0001>
module attributes {stable_mosaic.version = 11 : i64} {
  func.func @_copy_kernel(%arg0: i32, %arg1: memref<1x256xf32, #tpu.memory_space<vmem>>, %arg2: memref<1x256xf32, #tpu.memory_space<vmem>>) attributes {dimension_semantics = [#tpu.dimension_semantics<parallel>], iteration_bounds = array<i64: 1>, scalar_prefetch = 0 : i64, scratch_operands = 0 : i64, tpu.core_type = #tpu.core_type<tc>, window_params = [{transform_indices = @transform_0, window_bounds = array<i64: 1, 256>}, {transform_indices = @transform_1, window_bounds = array<i64: 1, 256>}]} {
    %c0 = arith.constant 0 : index
    %c0_0 = arith.constant 0 : index
    %0 = vector.load %arg1[%c0, %c0_0] : memref<1x256xf32, #tpu.memory_space<vmem>>, vector<1x256xf32>
    %c0_1 = arith.constant 0 : index
    %c0_2 = arith.constant 0 : index
    %1 = vector.load %arg2[%c0_1, %c0_2] : memref<1x256xf32, #tpu.memory_space<vmem>>, vector<1x256xf32>
    tpu.vector_store %arg2[%c0_1, %c0_2], %0 {strides = array<i32>} : memref<1x256xf32, #tpu.memory_space<vmem>>, vector<1x256xf32>,
    return
  }
  func.func @transform_0(%arg0: i32) -> (i32, i32) {
    %c0_i32 = arith.constant 0 : i32
    %c0_i32_0 = arith.constant 0 : i32
    return %arg0, %c0_i32 : i32, i32
  }
  func.func @transform_1(%arg0: i32) -> (i32, i32) {
    %c0_i32 = arith.constant 0 : i32
    %c0_i32_0 = arith.constant 0 : i32
    return %arg0, %c0_i32 : i32, i32
  }
}

</mosaic_0001>

<llo_original>
// kernel: tpu_custom_call.1
$region0: #{tpu_custom_call.1}
  #allocation0 [shape = 'u32[]', space=smem, size = 0x4, offset = 0x4, fixed_abs, tag = 'smem constant byte address 0x4 - core index']
  #allocation1 [shape = 'u32[144,128]{1,0:T(1,128)}', space=vmem, size = 0x12000, scoped, tag = 'internal scratch']
  %s0 = inlined_call_operand.hbm [shape: f32[1,256], index: 0, kind: input, shape index: {}]
  %s1 = inlined_call_operand.hbm [shape: f32[1,256], index: 1, kind: output, shape index: {}]
  %s2 = sld [smem:[#allocation0]]
  $region18: #{tpu_custom_call.1} parent=0
    _
  %s4 = ssub.s32 1, %s2
  %s5 = scalar_select 0, %s4, %s2
  $region1: #{tpu_custom_call.1} parent=0
    #allocation2 [shape = 'u8[1024]{0}', space=vmem, size = 0x400, scoped, tag = 'input window, operand 0, single buffered']
    #allocation3 [shape = 's32[1]{0}', space=sflag, size = 0x4, scoped, tag = 'scoped memory for tpu_custom_call.1']
    #allocation4 [shape = 's32[1]{0}', space=sflag, size = 0x4, scoped, tag = 'scoped memory for tpu_custom_call.1']
    #allocation5 [shape = 'u8[1024]{0}', space=vmem, size = 0x400, scoped, tag = 'output window, operand 0, single buffered']
    %6 = vsyncpa [#allocation3], 0
    %7 = vsyncpa [#allocation4], 0
    // Predicated region
    $region2: #{tpu_custom_call.1} parent=1 // pred_check
      _
    $region3: #{tpu_custom_call.1} parent=1 // pred_check_branch
      %9 = sbr.rel (0) target = $region5
    $region4: #{tpu_custom_call.1} parent=1 // pred_region
      %s11 = ssub.s32 32, 32
      %12 = vsyncadd [#allocation3], %s11
      %s14 = sshll.u32 [#allocation2], 4
      %s15 = int_to_ptr.vmem [resolvable:$true] %s14
      %17 = dma.hbm_to_vmem [thread:$0]  %s0, 32, %s15, [#allocation3]
    $region5: #{tpu_custom_call.1} parent=1 // pred_fallthru
      _
    // Predicated region
    $region6: #{tpu_custom_call.1} parent=1 // pred_check
      _
    $region7: #{tpu_custom_call.1} parent=1 // pred_check_branch
      %19 = sbr.rel (0) target = $region9
    $region8: #{tpu_custom_call.1} parent=1 // pred_region
      %20 = dma.done [#allocation3], 32
    $region9: #{tpu_custom_call.1} parent=1 // pred_fallthru
      _
    %v21 = vld [vmem:[#allocation2] sm:$0x3]
    %v22 = vlaneseq
    %vm23 = vcmp.ge.s32.totalorder %v22, 0
    %vm24 = vcmp.lt.s32.totalorder %v22, 256
    %vm25 = vmand %vm23, %vm24
    %26 = vst.msk [vmem:[#allocation5] sm:$0x3] %vm25, %v21
    // Predicated region
    $region10: #{tpu_custom_call.1} parent=1 // pred_check
      _
    $region11: #{tpu_custom_call.1} parent=1 // pred_check_branch
      %28 = sbr.rel (0) target = $region13
    $region12: #{tpu_custom_call.1} parent=1 // pred_region
      %s30 = ssub.s32 32, 32
      %31 = vsyncadd [#allocation4], %s30
      %s33 = sshll.u32 [#allocation5], 4
      %s34 = int_to_ptr.vmem [resolvable:$true] %s33
      %36 = dma.vmem_to_hbm [thread:$0]  %s34, 32, %s1, [#allocation4]
    $region13: #{tpu_custom_call.1} parent=1 // pred_fallthru
      _
    // Predicated region
    $region14: #{tpu_custom_call.1} parent=1 // pred_check
      _
    $region15: #{tpu_custom_call.1} parent=1 // pred_check_branch
      %38 = sbr.rel (0) target = $region17
    $region16: #{tpu_custom_call.1} parent=1 // pred_region
      %39 = dma.done [#allocation4], 32
    $region17: #{tpu_custom_call.1} parent=1 // pred_fallthru
      _
    %40 = vsyncpa [#allocation3], 1
    %41 = vsyncpa [#allocation4], 1

</llo_original>
